<compile_context>
chip_gen: v5e
topology: v5e:2x2
jax: 0.10.0
libtpu: 0.0.40
codegen_flags: <defaults>
</compile_context>

<pallas_src>
import functools

import jax
import jax.numpy as jnp
from jax import lax
from jax.experimental import pallas as pl
from jax.experimental.pallas import tpu as pltpu

MAX_DMA_IN_FLIGHT = 32          # per-row DMA semaphore-bank depth (review: 32-64)
MAX_TPB = 512                   # max tokens per grid block
_V_CHUNK = 512                  # vocab chunk size for the one-hot MXU path
_MAX_ONEHOT_CHUNKS = 64         # cap on unrolled vocab chunks in the one-hot kernel
_MAX_PREFETCH_IDS = 64 * 1024   # cap scalar-prefetched ids per pallas_call (~256 KiB SMEM)


def _round_up(x, m):
    return (x + m - 1) // m * m


def _round_down8(x):
    return max(8, (x // 8) * 8)


def _vmem_budget_bytes():
    """Per-generation usable VMEM budget (leave ~25% headroom for the compiler)."""
    try:
        kind = jax.devices()[0].device_kind.lower()
    except Exception:
        kind = ""
    if ("v4" in kind) or ("v5" in kind) or ("v6" in kind):
        capacity = 128 * 1024 * 1024       # v4/v5e/v5p/v6e: 128 MiB VMEM
    else:
        capacity = 64 * 1024 * 1024        # v7x per-TC VMEM; conservative default
    return (capacity * 3) // 4


# ---------------------------------------------------------------------------
# Path A: VMEM-resident table, chunked one-hot MXU gather.
# ---------------------------------------------------------------------------
def _onehot_kernel(ids_ref, emb_ref, out_ref):
    # ids_ref : VMEM (tpb, 1) int32 token ids for this block
    # emb_ref : VMEM (V, D)   resident embedding table (constant block index)
    # out_ref : VMEM (tpb, D) output block
    tpb, D = out_ref.shape
    V = emb_ref.shape[0]
    ids = jnp.clip(ids_ref[...], 0, V - 1)          # in-kernel OOB clamp (VPU, free)
    acc = jnp.zeros((tpb, D), jnp.float32)
    # Chunk the vocab so the (tpb, chunk) one-hot intermediate stays bounded.
    for start in range(0, V, _V_CHUNK):
        size = min(_V_CHUNK, V - start)
        iota = lax.broadcasted_iota(jnp.int32, (tpb, size), 1) + start
        onehot = (iota == ids).astype(emb_ref.dtype)             # (tpb, size)
        acc = acc + jnp.dot(onehot, emb_ref[start:start + size, :],
                            preferred_element_type=jnp.float32)
    out_ref[...] = acc.astype(out_ref.dtype)


def _lookup_onehot(flat_ids, emb_table, tpb, vmem_limit):
    n_pad = flat_ids.shape[0]
    V, D = emb_table.shape
    ids_col = flat_ids.reshape(n_pad, 1)
    return pl.pallas_call(
        _onehot_kernel,
        out_shape=jax.ShapeDtypeStruct((n_pad, D), emb_table.dtype),
        grid_spec=pltpu.PrefetchScalarGridSpec(
            num_scalar_prefetch=0,
            grid=(n_pad // tpb,),
            in_specs=[
                pl.BlockSpec((tpb, 1), lambda i: (i, 0)),
                pl.BlockSpec((V, D), lambda i: (0, 0)),   # constant index -> not refetched
            ],
            out_specs=pl.BlockSpec((tpb, D), lambda i: (i, 0)),
        ),
        compiler_params=pltpu.CompilerParams(
            dimension_semantics=("parallel",),
            vmem_limit_bytes=vmem_limit),
    )(ids_col, emb_table)


# ---------------------------------------------------------------------------
# Path B: HBM-resident table, wave-pipelined per-row DMA gather into out_ref.
# ---------------------------------------------------------------------------
def _dma_gather_kernel(ids_ref, emb_hbm, out_ref, sems, *, nsem):
    # ids_ref : SMEM (n_call,) int32 scalar-prefetched token ids (capped per call)
    # emb_hbm : HBM ref (V, D)       (memory_space=pl.ANY -> manual DMA)
    # out_ref : VMEM (tpb, D) output block; rows are DMA'd straight into it
    # sems    : DMA semaphore bank (nsem,)
    tpb = out_ref.shape[0]
    V = emb_hbm.shape[0]
    base = pl.program_id(0) * tpb
    nprol = min(nsem, tpb)

    def issue(t, tok):
        tok = jnp.clip(tok, 0, V - 1)                    # in-kernel OOB clamp
        pltpu.make_async_copy(emb_hbm.at[tok], out_ref.at[t],
                              sems.at[t % nsem]).start()

    def wait_row(t):
        # Size-matched descriptor for the copy issued for row t (row 0 as dummy src;
        # every row copy has identical byte size).
        pltpu.make_async_copy(emb_hbm.at[0], out_ref.at[t],
                              sems.at[t % nsem]).wait()

    # Prologue: fill the semaphore bank -- issue-only, fully unrolled, no branch.
    for t in range(nprol):
        issue(t, ids_ref[base + t])

    # Steady state: read the next id BEFORE the wait (DMA waits break SMEM
    # sst->sld forwarding), then retire the oldest copy, then issue this row.
    def steady(t, carry):
        tok = ids_ref[base + t]
        wait_row(t - nsem)
        issue(t, tok)
        return carry

    lax.fori_loop(nprol, tpb, steady, 0, unroll=8)

    # Drain the last nprol in-flight copies (fully unrolled).
    for t in range(tpb - nprol, tpb):
        wait_row(t)


def _lookup_dma_gather(flat_ids, emb_table, tpb, vmem_limit):
    n_call = flat_ids.shape[0]
    V, D = emb_table.shape
    nsem = min(MAX_DMA_IN_FLIGHT, tpb)
    kernel = functools.partial(_dma_gather_kernel, nsem=nsem)
    return pl.pallas_call(
        kernel,
        out_shape=jax.ShapeDtypeStruct((n_call, D), emb_table.dtype),
        grid_spec=pltpu.PrefetchScalarGridSpec(
            num_scalar_prefetch=1,                          # ids -> SMEM (capped per call)
            grid=(n_call // tpb,),
            in_specs=[pl.BlockSpec(memory_space=pl.ANY)],   # table stays in HBM
            out_specs=pl.BlockSpec((tpb, D), lambda i, ids: (i, 0)),
            scratch_shapes=[pltpu.SemaphoreType.DMA((nsem,))],
        ),
        compiler_params=pltpu.CompilerParams(
            dimension_semantics=("parallel",),
            vmem_limit_bytes=vmem_limit),
    )(flat_ids, emb_table)


# ---------------------------------------------------------------------------
# Public wrapper: Pallas equivalent of `emb[token_ids]`.
# ---------------------------------------------------------------------------
def embedding_lookup(token_ids, emb_table, *, gather_from_hbm=None):
    V, D = emb_table.shape
    lead_shape = token_ids.shape
    flat = token_ids.reshape(-1).astype(jnp.int32)
    n = int(flat.shape[0])
    if n == 0:
        return jnp.zeros((*lead_shape, D), emb_table.dtype)

    itemsize = emb_table.dtype.itemsize
    budget = _vmem_budget_bytes()
    is_float = jnp.issubdtype(emb_table.dtype, jnp.floating)

    # One-hot path VMEM accounting: double-buffered table block + double-buffered
    # (tpb, D) output + f32 accumulator + (tpb, _V_CHUNK) one-hot chunk + ids.
    per_tok_onehot = 2 * D * itemsize + 4 * D + 4 * _V_CHUNK + 16
    table_resident = 2 * V * D * itemsize          # pipeline double-buffers the table block
    onehot_ok = (
        is_float
        and V <= _V_CHUNK * _MAX_ONEHOT_CHUNKS
        and table_resident + 8 * per_tok_onehot <= budget)

    if gather_from_hbm is None:
        gather_from_hbm = not onehot_ok
    elif not gather_from_hbm and not onehot_ok:
        gather_from_hbm = True    # requested MXU path can't fit (or int table) -> fall back

    # Tokens per grid block (multiple of 8, capped by the VMEM budget).
    if gather_from_hbm:
        tpb_cap = min(MAX_TPB, budget // max(3 * D * itemsize, 1))
    else:
        tpb_cap = min(MAX_TPB, (budget - table_resident) // per_tok_onehot)
    tpb_cap = _round_down8(int(tpb_cap))

    if n <= 8:
        tpb = 8
    elif n <= tpb_cap:
        # Split small workloads into >=2 grid blocks so both of v7x's
        # TensorCores get work under dimension_semantics=("parallel",).
        tpb = min(tpb_cap, _round_up((n + 1) // 2, 8))
    else:
        tpb = tpb_cap

    n_pad = _round_up(n, tpb)
    if n_pad != n:
        flat = jnp.pad(flat, (0, n_pad - n))   # padded ids gather row 0; sliced off below

    vmem_limit = int(budget)

    if gather_from_hbm:
        # Cap the scalar-prefetched id array per pallas_call so its 1-D SMEM
        # buffer stays bounded (~256 KiB) regardless of batch*seq.
        seg = max(tpb, (_MAX_PREFETCH_IDS // tpb) * tpb)
        parts = [
            _lookup_dma_gather(flat[s:s + seg], emb_table, tpb, vmem_limit)
            for s in range(0, n_pad, seg)
        ]
        out_flat = parts[0] if len(parts) == 1 else jnp.concatenate(parts, axis=0)
    else:
        out_flat = _lookup_onehot(flat, emb_table, tpb, vmem_limit)

    return out_flat[:n].reshape(*lead_shape, D)


if __name__ == "__main__":
    num_embeddings = 64
    embedding_dim = 128
    batch, seq = 2, 8

    key = jax.random.PRNGKey(0)
    k_emb, k_ids, k_ids2 = jax.random.split(key, 3)

    # Deterministic init matching nn.init.trunc_normal_(mean=0, std=1, a=-3, b=3)
    emb_table = jax.random.truncated_normal(
        k_emb, lower=-3.0, upper=3.0,
        shape=(num_embeddings, embedding_dim), dtype=jnp.float32)

    token_ids = jax.random.randint(
        k_ids, (batch, seq), minval=0, maxval=num_embeddings, dtype=jnp.int32)
    ref = jnp.take(emb_table, token_ids, axis=0)

    # Path A (auto-selected: table fits the VMEM budget): one-hot MXU gather.
    out_a = jax.block_until_ready(embedding_lookup(token_ids, emb_table))
    assert out_a.shape == (batch, seq, embedding_dim)
    assert out_a.dtype == emb_table.dtype
    assert jnp.allclose(out_a, ref), "one-hot path mismatch vs reference"

    # Path B (forced): HBM-resident table + per-row DMA gather straight into out_ref.
    out_b = jax.block_until_ready(
        embedding_lookup(token_ids, emb_table, gather_from_hbm=True))
    assert jnp.allclose(out_b, ref), "DMA-gather path mismatch vs reference"

    # Multi-block + internal-padding coverage (N=400 -> 2 blocks of 200).
    token_ids2 = jax.random.randint(
        k_ids2, (2, 200), minval=0, maxval=num_embeddings, dtype=jnp.int32)
    ref2 = jnp.take(emb_table, token_ids2, axis=0)
    out_c = jax.block_until_ready(embedding_lookup(token_ids2, emb_table))
    out_d = jax.block_until_ready(
        embedding_lookup(token_ids2, emb_table, gather_from_hbm=True))
    assert jnp.allclose(out_c, ref2), "multi-block one-hot path mismatch"
    assert jnp.allclose(out_d, ref2), "multi-block DMA-gather path mismatch"

    print("KERNEL_OK")
</pallas_src>

<mosaic_0001>
module attributes {stable_mosaic.version = 11 : i64} {
  func.func @_onehot_kernel(%arg0: i32, %arg1: memref<8x1xi32, #tpu.memory_space<vmem>>, %arg2: memref<64x128xf32, #tpu.memory_space<vmem>>, %arg3: memref<8x128xf32, #tpu.memory_space<vmem>>) attributes {dimension_semantics = [#tpu.dimension_semantics<parallel>], iteration_bounds = array<i64: 2>, scalar_prefetch = 0 : i64, scratch_operands = 0 : i64, tpu.core_type = #tpu.core_type<tc>, window_params = [{transform_indices = @transform_0, window_bounds = array<i64: 8, 1>}, {pipeline_mode = #tpu.pipeline_mode<synchronous>, transform_indices = @transform_1, window_bounds = array<i64: 64, 128>}, {transform_indices = @transform_2, window_bounds = array<i64: 8, 128>}]} {
    %c0 = arith.constant 0 : index
    %c0_0 = arith.constant 0 : index
    %0 = vector.load %arg1[%c0, %c0_0] : memref<8x1xi32, #tpu.memory_space<vmem>>, vector<8x1xi32>
    %c0_i32 = arith.constant 0 : i32
    %c63_i32 = arith.constant 63 : i32
    %1 = vector.broadcast %c0_i32 : i32 to vector<8x1xi32>
    %2 = arith.maxsi %1, %0 : vector<8x1xi32>
    %3 = vector.broadcast %c63_i32 : i32 to vector<8x1xi32>
    %4 = arith.minsi %3, %2 : vector<8x1xi32>
    %cst = arith.constant 0.000000e+00 : f32
    %5 = vector.broadcast %cst : f32 to vector<8x128xf32>
    %6 = tpu.iota {dimensions = array<i32: 1>} : vector<8x64xi32>
    %c0_i32_1 = arith.constant 0 : i32
    %7 = vector.broadcast %c0_i32_1 : i32 to vector<8x64xi32>
    %8 = arith.addi %6, %7 : vector<8x64xi32>
    %9 = vector.broadcast %4 : vector<8x1xi32> to vector<8x64xi32>
    %10 = arith.cmpi eq, %8, %9 : vector<8x64xi32>
    %11 = arith.extui %10 : vector<8x64xi1> to vector<8x64xi32>
    %12 = arith.sitofp %11 : vector<8x64xi32> to vector<8x64xf32>
    %c0_2 = arith.constant 0 : index
    %c0_3 = arith.constant 0 : index
    %13 = vector.load %arg2[%c0_2, %c0_3] : memref<64x128xf32, #tpu.memory_space<vmem>>, vector<64x128xf32>
    %cst_4 = arith.constant dense<0.000000e+00> : vector<8x128xf32>
    %14 = tpu.matmul %12, %13, %cst_4 {dimension_numbers = #tpu.dot_dimension_numbers<[1], [0], [0], [1], [0, 0, 1, 1], [], []>} : vector<8x64xf32>, vector<64x128xf32>, vector<8x128xf32> -> vector<8x128xf32>
    %15 = arith.addf %5, %14 : vector<8x128xf32>
    %c0_5 = arith.constant 0 : index
    %c0_6 = arith.constant 0 : index
    %16 = vector.load %arg3[%c0_5, %c0_6] : memref<8x128xf32, #tpu.memory_space<vmem>>, vector<8x128xf32>
    tpu.vector_store %arg3[%c0_5, %c0_6], %15 {strides = array<i32>} : memref<8x128xf32, #tpu.memory_space<vmem>>, vector<8x128xf32>,
    return
  }
  func.func @transform_0(%arg0: i32) -> (i32, i32) {
    %c0_i32 = arith.constant 0 : i32
    %c0_i32_0 = arith.constant 0 : i32
    return %arg0, %c0_i32 : i32, i32
  }
  func.func @transform_1(%arg0: i32) -> (i32, i32) {
    %c0_i32 = arith.constant 0 : i32
    %c0_i32_0 = arith.constant 0 : i32
    %c0_i32_1 = arith.constant 0 : i32
    return %c0_i32, %c0_i32_0 : i32, i32
  }
  func.func @transform_2(%arg0: i32) -> (i32, i32) {
    %c0_i32 = arith.constant 0 : i32
    %c0_i32_0 = arith.constant 0 : i32
    return %arg0, %c0_i32 : i32, i32
  }
}

</mosaic_0001>

<llo_original>
// kernel: tpu_custom_call.1
$region0: #{tpu_custom_call.1}
  #allocation0 [shape = 'u32[]', space=smem, size = 0x4, offset = 0x4, fixed_abs, tag = 'smem constant byte address 0x4 - core index']
  #allocation1 [shape = 'u32[72,128]{1,0:T(1,128)}', space=vmem, size = 0x9000, scoped, tag = 'internal scratch']
  %s0 = inlined_call_operand.vmem [shape: s32[16,1], index: 0, kind: input, shape index: {}]
  %s1 = inlined_call_operand.hbm [shape: f32[64,128], index: 1, kind: input, shape index: {}]
  %s2 = inlined_call_operand.hbm [shape: f32[16,128], index: 2, kind: output, shape index: {}]
  %s3 = sld [smem:[#allocation0]]
  $region45: #{tpu_custom_call.1} parent=0
    _
  %s5 = ssub.s32 1, %s3
  %s6 = scalar_select 0, %s5, %s3
  $region1: #{tpu_custom_call.1} parent=0
    #allocation2 [shape = 'u8[32768]{0}', space=vmem, size = 0x8000, scoped, tag = 'input window, operand 1, single buffered']
    #allocation3 [shape = 's32[2]{0}', space=sflag, size = 0x8, scoped, tag = 'scoped memory for tpu_custom_call.1']
    #allocation4 [shape = 's32[2]{0}', space=sflag, size = 0x8, scoped, tag = 'scoped memory for tpu_custom_call.1']
    #allocation5 [shape = 'u8[8192]{0}', space=vmem, size = 0x2000, scoped, tag = 'output window, operand 0']
    %7 = vsyncpa [#allocation3], 0
    %8 = vsyncpa [#allocation4], 0
    %s9 = scalar_lea.sflag [#allocation4], 1
    %10 = vsyncpa %s9, 0
    loop: start=0, step=1, limit=4
    $region2: #{tpu_custom_call.1} parent=1 // loop_pre_header
      _
    $region3: #{tpu_custom_call.1} parent=1 // loop_header
      %s12 = sphi 0, %s16
      %p13 = scmp.ge.s32.totalorder %s12, 4
      %s22 = sphi 0, %s24
      %s25 = sphi 0, %s22
      %s26 = sphi 0, %s25
      %s42 = sphi 0, %s26
      %s46 = sphi 0, %s46
      %s48 = sphi 0, %s46
      %s49 = sphi 0, %s48
      %s63 = sphi 0, %s49
      %s69 = sphi 0, %s71
      %s72 = sphi 0, %s69
      %s73 = sphi 0, %s72
      %s89 = sphi 0, %s73
    $region4: #{tpu_custom_call.1} parent=1 // loop_header_branch
      %15 = sbr.rel (%p13) target = $region8
    $region5: #{tpu_custom_call.1} parent=1 // loop_body
      %s17 = ssub.s32 %s12, 1
      %s18 = ssub.s32 %s12, 2
      %s19 = sadd.s32 %s12, 1
      %s20 = ssub.s32 %s12, %s19
      %p21 = scmp.eq.s32.totalorder %s20, 0
      %s23 = sadd.s32 %s22, 1
      %s24 = scalar_select %p21, %s22, %s23
      %p27 = pneg %p21
      %p28 = scmp.eq.s32.totalorder %s12, 1
      %p29 = por %p27, %p28
      %p30 = scmp.ne.s32.totalorder %s22, %s25
      %p31 = scmp.eq.s32.totalorder %s12, 0
      %p32 = por %p30, %p31
      %p33 = scmp.ne.s32.totalorder %s22, %s25
      %p34 = scmp.eq.s32.totalorder %s17, 1
      %p35 = por %p33, %p34
      %p36 = scmp.ne.s32.totalorder %s25, %s26
      %p37 = scmp.eq.s32.totalorder %s17, 0
      %p38 = por %p36, %p37
      %p39 = scmp.ne.s32.totalorder %s25, %s26
      %p40 = scmp.eq.s32.totalorder %s18, 1
      %p41 = por %p39, %p40
      %p43 = scmp.ne.s32.totalorder %s26, %s42
      %p44 = scmp.eq.s32.totalorder %s18, 0
      %p45 = por %p43, %p44
      %s47 = sadd.s32 %s46, 1
      %p50 = scmp.eq.s32.totalorder %s12, 1
      %p51 = scmp.ne.s32.totalorder %s46, %s48
      %p52 = scmp.eq.s32.totalorder %s12, 0
      %p53 = por %p51, %p52
      %p54 = scmp.ne.s32.totalorder %s46, %s48
      %p55 = scmp.eq.s32.totalorder %s17, 1
      %p56 = por %p54, %p55
      %p57 = scmp.ne.s32.totalorder %s48, %s49
      %p58 = scmp.eq.s32.totalorder %s17, 0
      %p59 = por %p57, %p58
      %p60 = scmp.ne.s32.totalorder %s48, %s49
      %p61 = scmp.eq.s32.totalorder %s18, 1
      %p62 = por %p60, %p61
      %p64 = scmp.ne.s32.totalorder %s49, %s63
      %p65 = scmp.eq.s32.totalorder %s18, 0
      %p66 = por %p64, %p65
      %s67 = ssub.s32 %s12, %s19
      %p68 = scmp.eq.s32.totalorder %s67, 0
      %s70 = sadd.s32 %s69, 1
      %s71 = scalar_select %p68, %s69, %s70
      %p74 = pneg %p68
      %p75 = scmp.eq.s32.totalorder %s12, 1
      %p76 = por %p74, %p75
      %p77 = scmp.ne.s32.totalorder %s69, %s72
      %p78 = scmp.eq.s32.totalorder %s12, 0
      %p79 = por %p77, %p78
      %p80 = scmp.ne.s32.totalorder %s69, %s72
      %p81 = scmp.eq.s32.totalorder %s17, 1
      %p82 = por %p80, %p81
      %p83 = scmp.ne.s32.totalorder %s72, %s73
      %p84 = scmp.eq.s32.totalorder %s17, 0
      %p85 = por %p83, %p84
      %p86 = scmp.ne.s32.totalorder %s72, %s73
      %p87 = scmp.eq.s32.totalorder %s18, 1
      %p88 = por %p86, %p87
      %p90 = scmp.ne.s32.totalorder %s73, %s89
      %p91 = scmp.eq.s32.totalorder %s18, 0
      %p92 = por %p90, %p91
      %p93 = scmp.le.s32.totalorder 1, %s12
      %p94 = scmp.lt.s32.totalorder %s12, 3
      %p95 = pnand %p93, %p94
      %p96 = pneg %p95
      // Predicated region
      $region9: #{tpu_custom_call.1} parent=5 // pred_check
        _
      $region10: #{tpu_custom_call.1} parent=5 // pred_check_branch
        %98 = sbr.rel (%p95) target = $region12
      $region11: #{tpu_custom_call.1} parent=5 // pred_region
        %s99 = ssub.s32 %s12, 1
        // Predicated region
        $region13: #{tpu_custom_call.1} parent=11 // pred_check
          %p100 = pneg %p59
        $region14: #{tpu_custom_call.1} parent=11 // pred_check_branch
          %102 = sbr.rel (%p100) target = $region16
        $region15: #{tpu_custom_call.1} parent=11 // pred_region
          %104 = vsyncadd [#allocation3], 0
          %s105 = sshll.u32 %s1, 4
          %s106 = int_to_ptr.hbm [resolvable:$true] %s105
          %s107 = sshll.u32 [#allocation2], 4
          %s108 = int_to_ptr.vmem [resolvable:$true] %s107
          %113 = dma.hbm_to_vmem [thread:$0]  %s106, 1024, %s108, [#allocation3], 128, 128, 8
        $region16: #{tpu_custom_call.1} parent=11 // pred_fallthru
          _
      $region12: #{tpu_custom_call.1} parent=5 // pred_fallthru
        _
      %p114 = scmp.lt.s32.totalorder %s12, 2
      // Predicated region
      $region17: #{tpu_custom_call.1} parent=5 // pred_check
        %p115 = pneg %p114
      $region18: #{tpu_custom_call.1} parent=5 // pred_check_branch
        %117 = sbr.rel (%p115) target = $region20
      $region19: #{tpu_custom_call.1} parent=5 // pred_region
        // Predicated region
        $region21: #{tpu_custom_call.1} parent=19 // pred_check
          %p118 = pneg %p32
        $region22: #{tpu_custom_call.1} parent=19 // pred_check_branch
          %120 = sbr.rel (%p118) target = $region24
        $region23: #{tpu_custom_call.1} parent=19 // pred_region
          %p121 = scmp.lt.s32.totalorder %s12, 1
          %s122 = scalar_select %p121, %s12, 1
          %s123 = smul.addr %s122, 8
          %s124 = scalar_lea.vmem %s0, %s123
        $region24: #{tpu_custom_call.1} parent=19 // pred_fallthru
          _
      $region20: #{tpu_custom_call.1} parent=5 // pred_fallthru
        _
      %p125 = scmp.le.s32.totalorder 1, %s12
      %p126 = scmp.lt.s32.totalorder %s12, 3
      %p127 = pnand %p125, %p126
      %p128 = pneg %p127
      // Predicated region
      $region25: #{tpu_custom_call.1} parent=5 // pred_check
        _
      $region26: #{tpu_custom_call.1} parent=5 // pred_check_branch
        %130 = sbr.rel (%p127) target = $region28
      $region27: #{tpu_custom_call.1} parent=5 // pred_region
        %s131 = ssub.s32 %s12, 1
        // Predicated region
        $region29: #{tpu_custom_call.1} parent=27 // pred_check
          %p132 = pneg %p59
        $region30: #{tpu_custom_call.1} parent=27 // pred_check_branch
          %134 = sbr.rel (%p132) target = $region32
        $region31: #{tpu_custom_call.1} parent=27 // pred_region
          %136 = dma.done [#allocation3], 1024
        $region32: #{tpu_custom_call.1} parent=27 // pred_fallthru
          _
        %p137 = scmp.lt.s32.totalorder %s17, 1
        %s138 = scalar_select %p137, %s17, 1
        %s139 = smul.addr %s138, 8
        %s140 = scalar_lea.vmem %s0, %s139
        %p141 = pneg %p38
        %p142 = pneg %p35
        %p143 = pneg %p59
        %p144 = pneg %p56
        %p145 = pneg %p85
        %p146 = pneg %p82
        %s147 = sand.u32 %s72, 1
        %s148 = scalar_lea.sflag [#allocation4], %s147
        %s149 = sand.u32 %s72, 1
        %s150 = smul.addr %s149, 8
        %s151 = scalar_lea.vmem [#allocation5], %s150
        %p152 = scmp.lt.s32.totalorder %s17, 1
        %s153 = scalar_select %p152, %s17, 1
        %s154 = smul.addr %s153, 8
        %s155 = scalar_lea.vmem %s0, %s154
        %v156 = vld [vmem:[%s155] sm:$0xff]
        %vm157 = vcmp.gt.s32.totalorder %v156, 0
        %v158 = vsel %vm157, %v156, 0
        %vm159 = vcmp.lt.s32.totalorder %v158, 63
        %v160 = vsel %vm159, %v158, 63
        %v161 = vlaneseq
        %v162 = vand.u32 %v161, 127
        %163 = vset.pattern.permute.xlu0 0
        %164 = vperm.xlu0 %163, %v160
        %v165 = vpop.permute.xlu0 %164
        %vm166 = vcmp.eq.s32.totalorder %v162, %v165
        %v167 = vsel %vm166, 1, 0
        %v168 = vcvt.s32.f32 %v167
        %v169 = vld [vmem:[#allocation2] sm:$0xff]
        %v170 = vld [vmem:[#allocation2 + $0x8] sm:$0xff]
        %v171 = vld [vmem:[#allocation2 + $0x10] sm:$0xff]
        %v172 = vld [vmem:[#allocation2 + $0x18] sm:$0xff]
        %v173 = vld [vmem:[#allocation2 + $0x20] sm:$0xff]
        %v174 = vld [vmem:[#allocation2 + $0x28] sm:$0xff]
        %v175 = vld [vmem:[#allocation2 + $0x30] sm:$0xff]
        %v176 = vld [vmem:[#allocation2 + $0x38] sm:$0xff]
        %vm177 = vcmask 523264
        %v179 = vsel %vm177, %v168, 0
        %181 = vmatpush.msra.mxu0 0.0
        %182 = vmatpush.msra.mxu0 0.0
        %183 = vmatpush.msra.mxu0 0.0
        %184 = vmatpush.msra.mxu0 0.0
        %185 = vmatpush.msra.mxu0 0.0
        %186 = vmatpush.msra.mxu0 0.0
        %187 = vmatpush.msra.mxu0 0.0
        %188 = vmatpush.msra.mxu0 0.0
        %189 = vmatpush.msra.mxu0 %v176
        %190 = vmatpush.msra.mxu0 %v175
        %191 = vmatpush.msra.mxu0 %v174
        %192 = vmatpush.msra.mxu0 %v173
        %193 = vmatpush.msra.mxu0 %v172
        %194 = vmatpush.msra.mxu0 %v171
        %195 = vmatpush.msra.mxu0 %v170
        %196 = vmatpush.msra.mxu0 %v169
        %197 = vmatmul.f32.gmra.mxu0 %v179
        %v198 = vpop.f32.mrf.mxu0
        %v199 = vadd.f32 0.0, %v198
        %200 = vdwg.mxu0
        %201 = vst [vmem:[%s151] sm:$0xff] %v199
        %s202 = sand.u32 %s72, 1
        %s203 = scalar_lea.sflag [#allocation4], %s202
        %s204 = sand.u32 %s72, 1
        %s205 = smul.addr %s204, 8
        %s206 = scalar_lea.vmem [#allocation5], %s205
        // Predicated region
        $region33: #{tpu_custom_call.1} parent=27 // pred_check
          %p207 = pneg %p82
        $region34: #{tpu_custom_call.1} parent=27 // pred_check_branch
          %209 = sbr.rel (%p207) target = $region36
        $region35: #{tpu_custom_call.1} parent=27 // pred_region
          %211 = vsyncadd %s203, 0
          %s212 = smul.addr %s17, 8
          %s213 = scalar_lea.hbm %s2, %s212
          %s215 = sshll.u32 %s206, 4
          %s216 = int_to_ptr.vmem [resolvable:$true] %s215
          %s217 = sshll.u32 %s213, 4
          %s218 = int_to_ptr.hbm [resolvable:$true] %s217
          %220 = dma.vmem_to_hbm [thread:$0]  %s216, 128, %s218, %s203
        $region36: #{tpu_custom_call.1} parent=27 // pred_fallthru
          _
      $region28: #{tpu_custom_call.1} parent=5 // pred_fallthru
        _
      %p221 = scmp.le.s32.totalorder 2, %s12
      // Predicated region
      $region37: #{tpu_custom_call.1} parent=5 // pred_check
        %p222 = pneg %p221
      $region38: #{tpu_custom_call.1} parent=5 // pred_check_branch
        %224 = sbr.rel (%p222) target = $region40
      $region39: #{tpu_custom_call.1} parent=5 // pred_region
        %s225 = ssub.s32 %s12, 2
        // Predicated region
        $region41: #{tpu_custom_call.1} parent=39 // pred_check
          %p226 = pneg %p88
        $region42: #{tpu_custom_call.1} parent=39 // pred_check_branch
          %228 = sbr.rel (%p226) target = $region44
        $region43: #{tpu_custom_call.1} parent=39 // pred_region
          %s229 = sand.u32 %s73, 1
          %s230 = scalar_lea.sflag [#allocation4], %s229
          %s231 = sand.u32 %s73, 1
          %s232 = smul.addr %s231, 8
          %s233 = scalar_lea.vmem [#allocation5], %s232
          %235 = dma.done %s230, 128
        $region44: #{tpu_custom_call.1} parent=39 // pred_fallthru
          _
      $region40: #{tpu_custom_call.1} parent=5 // pred_fallthru
        _
    $region6: #{tpu_custom_call.1} parent=1 // loop_footer
      %s16 = sadd.s32 1, %s12
    $region7: #{tpu_custom_call.1} parent=1 // loop_footer_branch
      %11 = sbr.rel target = $region3
    $region8: #{tpu_custom_call.1} parent=1 // loop_exit
      _
    %236 = vsyncpa [#allocation3], 1
    %s237 = scalar_lea.sflag [#allocation3], 1
    %238 = vsyncpa %s237, 1
    %239 = vsyncpa [#allocation4], 1
    %s240 = scalar_lea.sflag [#allocation4], 1
    %241 = vsyncpa %s240, 1

</llo_original>
